<compile_context>
chip_gen: v5e
topology: v5e:2x2
jax: 0.10.0
libtpu: 0.0.40
codegen_flags: <defaults>
</compile_context>

<pallas_src>
import functools

import jax
import jax.numpy as jnp
from jax.experimental import pallas as pl
from jax.experimental.pallas import tpu as pltpu


# ---------------------------------------------------------------------------
# Kernels
# ---------------------------------------------------------------------------

def _se_fused_kernel(inv_hw, x_ref, w1_ref, w2t_ref, o_ref):
    """Single-pass SE: one (Bblk, C, HW) slab per grid step."""
    xb = x_ref[...]                                                # input dtype
    # Squeeze: global average pool == lane-axis reduction, f32 accumulation.
    m = jnp.sum(xb, axis=-1, dtype=jnp.float32) * inv_hw           # (Bblk, C)
    # Excitation: sigmoid(relu(m @ w1^T) @ w2^T); both weights keep C in lanes.
    h = jax.lax.dot_general(m, w1_ref[...], (((1,), (1,)), ((), ())),
                            preferred_element_type=jnp.float32)    # (Bblk, hid)
    h = jnp.maximum(h, 0.0)
    s = jnp.dot(h, w2t_ref[...], preferred_element_type=jnp.float32)  # (Bblk, C)
    s = jax.nn.sigmoid(s)
    # Scale in the input dtype (packed bf16 VPU on v6e/v7x; no live f32 copy).
    o_ref[...] = (xb * s.astype(xb.dtype)[:, :, None]).astype(o_ref.dtype)


def _se_gate_kernel(inv_hw, hw_t, true_hw, needs_mask,
                    x_ref, w1_ref, w2t_ref, g_ref):
    """Fallback phase 1: accumulate per-channel sums over HW tiles into the
    resident (1, C, 1) gate block; on the last tile run the excitation and
    overwrite the block with sigmoid gate values."""
    hw_i = pl.program_id(1)

    @pl.when(hw_i == 0)
    def _():
        g_ref[...] = jnp.zeros_like(g_ref)

    xb = x_ref[...]                                                # (1, C, hw_t)
    if needs_mask:
        lane = jax.lax.broadcasted_iota(jnp.int32, xb.shape, xb.ndim - 1)
        valid = (lane + hw_i * hw_t) < true_hw
        part = jnp.sum(jnp.where(valid, xb.astype(jnp.float32), 0.0),
                       axis=-1, keepdims=True)
    else:
        part = jnp.sum(xb, axis=-1, keepdims=True, dtype=jnp.float32)
    g_ref[...] += part                                             # (1, C, 1)

    @pl.when(hw_i == pl.num_programs(1) - 1)
    def _():
        m = g_ref[...][:, :, 0] * inv_hw                           # (1, C)
        h = jax.lax.dot_general(m, w1_ref[...], (((1,), (1,)), ((), ())),
                                preferred_element_type=jnp.float32)
        h = jnp.maximum(h, 0.0)
        s = jnp.dot(h, w2t_ref[...], preferred_element_type=jnp.float32)
        g_ref[...] = jax.nn.sigmoid(s)[:, :, None]                 # (1, C, 1)


def _se_scale_kernel(x_ref, g_ref, o_ref):
    """Fallback phase 2: per-(b, c) gate broadcast along the HW lane axis.
    Gate arrives as (1, C, 1) (C in sublanes) -> no per-tile relayout."""
    xb = x_ref[...]
    o_ref[...] = (xb * g_ref[...].astype(xb.dtype)).astype(o_ref.dtype)


# ---------------------------------------------------------------------------
# Wrapper / tiling policy
# ---------------------------------------------------------------------------

def _vmem_capacity_bytes():
    try:
        cap = int(pltpu.get_tpu_info().vmem_capacity_bytes)
        if cap > 0:
            return cap
    except Exception:
        pass
    return 64 << 20  # conservative (v7x-sized) default


def _pick_block_b(B, per_batch_bytes, budget_bytes):
    """Largest divisor of B whose slab fits the budget, capped at B//2 so the
    "parallel" batch axis always has >= 2 steps for v7x megacore sharding."""
    cap = max(1, budget_bytes // max(per_batch_bytes, 1))
    if B >= 2:
        cap = min(cap, B // 2)
    bblk = int(max(1, min(B, cap)))
    while B % bblk:
        bblk -= 1
    return bblk


def se_layer(x_nchw, w1, w2, *, block_b=None, block_budget_bytes=None):
    """SE layer forward. x_nchw: (B, C, H, W); w1: (hidden, C); w2: (C, hidden)."""
    B, C, H, W = x_nchw.shape
    HW = H * W
    hidden = w1.shape[0]
    itemsize = jnp.dtype(x_nchw.dtype).itemsize
    w_itemsize = jnp.dtype(w1.dtype).itemsize

    x = x_nchw.reshape(B, C, HW)            # contiguous view, no transpose
    w2t = jnp.transpose(w2)                 # (hidden, C): C in lanes, tiny

    cap = _vmem_capacity_bytes()
    # ~cap/10 per x block => double-buffered in + out stays well under half VMEM
    # (≈6.4 MiB blocks on v7x, ≈12.8 MiB on v5e/v6e).
    budget = (block_budget_bytes if block_budget_bytes is not None
              else int(min(16 << 20, max(2 << 20, cap // 10))))
    per_batch_bytes = C * HW * itemsize
    w_bytes = 2 * hidden * C * w_itemsize
    inv_hw = 1.0 / float(HW)

    use_fallback = (block_b is None) and (per_batch_bytes > budget)

    if not use_fallback:
        bblk = block_b if block_b is not None else _pick_block_b(B, per_batch_bytes, budget)
        assert B % bblk == 0, "block_b must divide B"
        blk_bytes = bblk * per_batch_bytes
        usage = 4 * blk_bytes + 4 * w_bytes + (4 << 20)
        vmem_limit = int(min(int(cap * 0.85), max(32 << 20, usage)))

        cost = pl.CostEstimate(
            flops=2 * B * C * HW + 4 * B * C * hidden,
            transcendentals=B * C,
            bytes_accessed=2 * B * C * HW * itemsize + w_bytes,
        )
        # TODO(synk): for HW not a multiple of 128 (7x7/14x14 stages) stores are
        # lane-masked; a lane-dense in-kernel repack could recover store BW.
        out = pl.pallas_call(
            functools.partial(_se_fused_kernel, inv_hw),
            out_shape=jax.ShapeDtypeStruct((B, C, HW), x.dtype),
            grid_spec=pltpu.PrefetchScalarGridSpec(
                num_scalar_prefetch=0,
                grid=(B // bblk,),
                in_specs=[
                    pl.BlockSpec((bblk, C, HW), lambda b: (b, 0, 0)),
                    pl.BlockSpec((hidden, C), lambda b: (0, 0)),
                    pl.BlockSpec((hidden, C), lambda b: (0, 0)),
                ],
                out_specs=pl.BlockSpec((bblk, C, HW), lambda b: (b, 0, 0)),
            ),
            compiler_params=pltpu.CompilerParams(
                dimension_semantics=("parallel",),
                vmem_limit_bytes=vmem_limit,
            ),
            cost_estimate=cost,
        )(x, w1, w2t)
        return out.reshape(B, C, H, W)

    # ---- HW-tiled two-pass fallback: a (C, HW) slab exceeds the budget ------
    hw_cap = max(128, (budget // max(C * itemsize, 1)) // 128 * 128)
    hw_pad = pl.cdiv(HW, 128) * 128
    hw_t = int(min(hw_cap, hw_pad))
    n_hw = int(pl.cdiv(HW, hw_t))
    needs_mask = (HW % hw_t) != 0
    blk_bytes = C * hw_t * itemsize
    usage = 4 * blk_bytes + 4 * w_bytes + (4 << 20)
    vmem_limit = int(min(int(cap * 0.85), max(32 << 20, usage)))

    gate_cost = pl.CostEstimate(
        flops=B * C * HW + 4 * B * C * hidden,
        transcendentals=B * C,
        bytes_accessed=B * C * HW * itemsize + w_bytes + B * C * 4,
    )
    gate = pl.pallas_call(
        functools.partial(_se_gate_kernel, inv_hw, hw_t, HW, needs_mask),
        out_shape=jax.ShapeDtypeStruct((B, C, 1), jnp.float32),
        grid_spec=pltpu.PrefetchScalarGridSpec(
            num_scalar_prefetch=0,
            grid=(B, n_hw),
            in_specs=[
                pl.BlockSpec((1, C, hw_t), lambda b, k: (b, 0, k)),
                pl.BlockSpec((hidden, C), lambda b, k: (0, 0)),
                pl.BlockSpec((hidden, C), lambda b, k: (0, 0)),
            ],
            out_specs=pl.BlockSpec((1, C, 1), lambda b, k: (b, 0, 0)),
        ),
        compiler_params=pltpu.CompilerParams(
            dimension_semantics=("parallel", "arbitrary"),
            vmem_limit_bytes=vmem_limit,
        ),
        cost_estimate=gate_cost,
    )(x, w1, w2t)

    scale_cost = pl.CostEstimate(
        flops=B * C * HW,
        transcendentals=0,
        bytes_accessed=2 * B * C * HW * itemsize + B * C * 4,
    )
    out = pl.pallas_call(
        _se_scale_kernel,
        out_shape=jax.ShapeDtypeStruct((B, C, HW), x.dtype),
        grid_spec=pltpu.PrefetchScalarGridSpec(
            num_scalar_prefetch=0,
            grid=(B, n_hw),
            in_specs=[
                pl.BlockSpec((1, C, hw_t), lambda b, k: (b, 0, k)),
                pl.BlockSpec((1, C, 1), lambda b, k: (b, 0, 0)),
            ],
            out_specs=pl.BlockSpec((1, C, hw_t), lambda b, k: (b, 0, k)),
        ),
        compiler_params=pltpu.CompilerParams(
            dimension_semantics=("parallel", "parallel"),
            vmem_limit_bytes=vmem_limit,
        ),
        cost_estimate=scale_cost,
    )(x, gate)
    return out.reshape(B, C, H, W)


def se_layer_ref(x_nchw, w1, w2):
    """Pure-JAX reference matching the PyTorch module semantics."""
    y = jnp.mean(x_nchw, axis=(2, 3))                  # (B, C)
    y = jnp.maximum(y @ w1.T, 0.0)                     # (B, hidden)
    y = jax.nn.sigmoid(y @ w2.T)                       # (B, C)
    return x_nchw * y[:, :, None, None]


if __name__ == "__main__":
    # Module config: channel=64, reduction=16 -> hidden=4; HW=256 (lane-dense).
    B, C, H, W = 4, 64, 16, 16
    reduction = 16
    hidden = C // reduction

    key = jax.random.PRNGKey(0)
    kx, k1, k2 = jax.random.split(key, 3)
    x = jax.random.normal(kx, (B, C, H, W), dtype=jnp.float32)
    # Shapes match nn.Linear(C, C//r, bias=False) / nn.Linear(C//r, C, bias=False)
    w1 = jax.random.normal(k1, (hidden, C), dtype=jnp.float32) * 0.1
    w2 = jax.random.normal(k2, (C, hidden), dtype=jnp.float32) * 0.1

    ref = jax.block_until_ready(se_layer_ref(x, w1, w2))

    # Fast single-pass path (auto block selection, >=2 grid steps).
    out = jax.block_until_ready(se_layer(x, w1, w2))
    assert out.shape == (B, C, H, W)
    assert jnp.allclose(out, ref, atol=1e-5, rtol=1e-5), "fused path mismatch"

    # HW-tiled two-pass fallback, forced via a tiny block budget.
    out_fb = jax.block_until_ready(se_layer(x, w1, w2, block_budget_bytes=32 << 10))
    assert jnp.allclose(out_fb, ref, atol=1e-5, rtol=1e-5), "fallback path mismatch"

    print("KERNEL_OK")
</pallas_src>

<mosaic_0001>
module attributes {stable_mosaic.version = 11 : i64} {
  func.func @_se_fused_kernel(%arg0: i32, %arg1: memref<2x64x256xf32, #tpu.memory_space<vmem>>, %arg2: memref<4x64xf32, #tpu.memory_space<vmem>>, %arg3: memref<4x64xf32, #tpu.memory_space<vmem>>, %arg4: memref<2x64x256xf32, #tpu.memory_space<vmem>>) attributes {dimension_semantics = [#tpu.dimension_semantics<parallel>], iteration_bounds = array<i64: 2>, scalar_prefetch = 0 : i64, scratch_operands = 0 : i64, tpu.core_type = #tpu.core_type<tc>, window_params = [{transform_indices = @transform_0, window_bounds = array<i64: 2, 64, 256>}, {pipeline_mode = #tpu.pipeline_mode<synchronous>, transform_indices = @transform_1, window_bounds = array<i64: 4, 64>}, {pipeline_mode = #tpu.pipeline_mode<synchronous>, transform_indices = @transform_2, window_bounds = array<i64: 4, 64>}, {transform_indices = @transform_3, window_bounds = array<i64: 2, 64, 256>}]} {
    %c0 = arith.constant 0 : index
    %c0_0 = arith.constant 0 : index
    %c0_1 = arith.constant 0 : index
    %0 = vector.load %arg1[%c0, %c0_0, %c0_1] : memref<2x64x256xf32, #tpu.memory_space<vmem>>, vector<2x64x256xf32>
    %cst = arith.constant dense<0.000000e+00> : vector<2x64xf32>
    %1 = vector.multi_reduction <add>, %0, %cst [2] : vector<2x64x256xf32> to vector<2x64xf32>
    %cst_2 = arith.constant 3.906250e-03 : f32
    %2 = vector.broadcast %cst_2 : f32 to vector<2x64xf32>
    %3 = arith.mulf %1, %2 : vector<2x64xf32>
    %c0_3 = arith.constant 0 : index
    %c0_4 = arith.constant 0 : index
    %4 = vector.load %arg2[%c0_3, %c0_4] : memref<4x64xf32, #tpu.memory_space<vmem>>, vector<4x64xf32>
    %cst_5 = arith.constant dense<0.000000e+00> : vector<2x4xf32>
    %5 = tpu.matmul %3, %4, %cst_5 {dimension_numbers = #tpu.dot_dimension_numbers<[1], [1], [0], [0], [0, 0, 1, 0], [], []>} : vector<2x64xf32>, vector<4x64xf32>, vector<2x4xf32> -> vector<2x4xf32>
    %cst_6 = arith.constant 0.000000e+00 : f32
    %6 = vector.broadcast %cst_6 : f32 to vector<2x4xf32>
    %7 = arith.maximumf %5, %6 : vector<2x4xf32>
    %c0_7 = arith.constant 0 : index
    %c0_8 = arith.constant 0 : index
    %8 = vector.load %arg3[%c0_7, %c0_8] : memref<4x64xf32, #tpu.memory_space<vmem>>, vector<4x64xf32>
    %cst_9 = arith.constant dense<0.000000e+00> : vector<2x64xf32>
    %9 = tpu.matmul %7, %8, %cst_9 {dimension_numbers = #tpu.dot_dimension_numbers<[1], [0], [0], [1], [0, 0, 1, 1], [], []>} : vector<2x4xf32>, vector<4x64xf32>, vector<2x64xf32> -> vector<2x64xf32>
    %10 = arith.negf %9 : vector<2x64xf32>
    %11 = math.exp %10 : vector<2x64xf32>
    %cst_10 = arith.constant 1.000000e+00 : f32
    %12 = vector.broadcast %cst_10 : f32 to vector<2x64xf32>
    %13 = arith.addf %12, %11 : vector<2x64xf32>
    %14 = arith.divf %12, %13 : vector<2x64xf32>
    %15 = vector.shape_cast %14 : vector<2x64xf32> to vector<2x64x1xf32>
    %16 = vector.broadcast %15 : vector<2x64x1xf32> to vector<2x64x256xf32>
    %17 = arith.mulf %0, %16 : vector<2x64x256xf32>
    %c0_11 = arith.constant 0 : index
    %c0_12 = arith.constant 0 : index
    %c0_13 = arith.constant 0 : index
    %18 = vector.load %arg4[%c0_11, %c0_12, %c0_13] : memref<2x64x256xf32, #tpu.memory_space<vmem>>, vector<2x64x256xf32>
    tpu.vector_store %arg4[%c0_11, %c0_12, %c0_13], %17 {strides = array<i32>} : memref<2x64x256xf32, #tpu.memory_space<vmem>>, vector<2x64x256xf32>,
    return
  }
  func.func @transform_0(%arg0: i32) -> (i32, i32, i32) {
    %c0_i32 = arith.constant 0 : i32
    %c0_i32_0 = arith.constant 0 : i32
    %c0_i32_1 = arith.constant 0 : i32
    return %arg0, %c0_i32, %c0_i32_0 : i32, i32, i32
  }
  func.func @transform_1(%arg0: i32) -> (i32, i32) {
    %c0_i32 = arith.constant 0 : i32
    %c0_i32_0 = arith.constant 0 : i32
    %c0_i32_1 = arith.constant 0 : i32
    return %c0_i32, %c0_i32_0 : i32, i32
  }
  func.func @transform_2(%arg0: i32) -> (i32, i32) {
    %c0_i32 = arith.constant 0 : i32
    %c0_i32_0 = arith.constant 0 : i32
    %c0_i32_1 = arith.constant 0 : i32
    return %c0_i32, %c0_i32_0 : i32, i32
  }
  func.func @transform_3(%arg0: i32) -> (i32, i32, i32) {
    %c0_i32 = arith.constant 0 : i32
    %c0_i32_0 = arith.constant 0 : i32
    %c0_i32_1 = arith.constant 0 : i32
    return %arg0, %c0_i32, %c0_i32_0 : i32, i32, i32
  }
}

</mosaic_0001>

<llo_original>
// kernel: tpu_custom_call.1
$region0: #{tpu_custom_call.1}
  #allocation0 [shape = 'u32[]', space=smem, size = 0x4, offset = 0x4, fixed_abs, tag = 'smem constant byte address 0x4 - core index']
  #allocation1 [shape = 'u32[72,128]{1,0:T(1,128)}', space=vmem, size = 0x9000, scoped, tag = 'internal scratch']
  %s0 = inlined_call_operand.hbm [shape: f32[4,64,256], index: 0, kind: input, shape index: {}]
  %s1 = inlined_call_operand.hbm [shape: f32[4,64], index: 1, kind: input, shape index: {}]
  %s2 = inlined_call_operand.hbm [shape: f32[4,64], index: 2, kind: input, shape index: {}]
  %s3 = inlined_call_operand.hbm [shape: f32[4,64,256], index: 3, kind: output, shape index: {}]
  %s4 = sld [smem:[#allocation0]]
  $region57: #{tpu_custom_call.1} parent=0
    _
  %s6 = ssub.s32 1, %s4
  %s7 = scalar_select 0, %s6, %s4
  $region1: #{tpu_custom_call.1} parent=0
    #allocation2 [shape = 'u8[262144]{0}', space=vmem, size = 0x40000, scoped, tag = 'input window, operand 0']
    #allocation3 [shape = 's32[2]{0}', space=sflag, size = 0x8, scoped, tag = 'scoped memory for tpu_custom_call.1']
    #allocation4 [shape = 's32[2]{0}', space=sflag, size = 0x8, scoped, tag = 'scoped memory for tpu_custom_call.1']
    #allocation5 [shape = 'u8[2048]{0}', space=vmem, size = 0x800, scoped, tag = 'input window, operand 1, single buffered']
    #allocation6 [shape = 's32[1]{0}', space=sflag, size = 0x4, scoped, tag = 'scoped memory for tpu_custom_call.1']
    #allocation7 [shape = 'u8[2048]{0}', space=vmem, size = 0x800, scoped, tag = 'input window, operand 2, single buffered']
    #allocation8 [shape = 'u8[262144]{0}', space=vmem, size = 0x40000, scoped, tag = 'output window, operand 0']
    %8 = vsyncpa [#allocation3], 0
    %s9 = scalar_lea.sflag [#allocation3], 1
    %10 = vsyncpa %s9, 0
    %11 = vsyncpa [#allocation6], 0
    %12 = vsyncpa [#allocation4], 0
    %s13 = scalar_lea.sflag [#allocation4], 1
    %14 = vsyncpa %s13, 0
    loop: start=0, step=1, limit=4
    $region2: #{tpu_custom_call.1} parent=1 // loop_pre_header
      _
    $region3: #{tpu_custom_call.1} parent=1 // loop_header
      %s16 = sphi 0, %s20
      %p17 = scmp.ge.s32.totalorder %s16, 4
      %s26 = sphi 0, %s28
      %s29 = sphi 0, %s26
      %s30 = sphi 0, %s29
      %s46 = sphi 0, %s30
      %s50 = sphi 0, %s50
      %s52 = sphi 0, %s50
      %s53 = sphi 0, %s52
      %s67 = sphi 0, %s53
      %s71 = sphi 0, %s71
      %s73 = sphi 0, %s71
      %s74 = sphi 0, %s73
      %s88 = sphi 0, %s74
      %s94 = sphi 0, %s96
      %s97 = sphi 0, %s94
      %s98 = sphi 0, %s97
      %s114 = sphi 0, %s98
    $region4: #{tpu_custom_call.1} parent=1 // loop_header_branch
      %19 = sbr.rel (%p17) target = $region8
    $region5: #{tpu_custom_call.1} parent=1 // loop_body
      %s21 = ssub.s32 %s16, 1
      %s22 = ssub.s32 %s16, 2
      %s23 = sadd.s32 %s16, 1
      %s24 = ssub.s32 %s16, %s23
      %p25 = scmp.eq.s32.totalorder %s24, 0
      %s27 = sadd.s32 %s26, 1
      %s28 = scalar_select %p25, %s26, %s27
      %p31 = pneg %p25
      %p32 = scmp.eq.s32.totalorder %s16, 1
      %p33 = por %p31, %p32
      %p34 = scmp.ne.s32.totalorder %s26, %s29
      %p35 = scmp.eq.s32.totalorder %s16, 0
      %p36 = por %p34, %p35
      %p37 = scmp.ne.s32.totalorder %s26, %s29
      %p38 = scmp.eq.s32.totalorder %s21, 1
      %p39 = por %p37, %p38
      %p40 = scmp.ne.s32.totalorder %s29, %s30
      %p41 = scmp.eq.s32.totalorder %s21, 0
      %p42 = por %p40, %p41
      %p43 = scmp.ne.s32.totalorder %s29, %s30
      %p44 = scmp.eq.s32.totalorder %s22, 1
      %p45 = por %p43, %p44
      %p47 = scmp.ne.s32.totalorder %s30, %s46
      %p48 = scmp.eq.s32.totalorder %s22, 0
      %p49 = por %p47, %p48
      %s51 = sadd.s32 %s50, 1
      %p54 = scmp.eq.s32.totalorder %s16, 1
      %p55 = scmp.ne.s32.totalorder %s50, %s52
      %p56 = scmp.eq.s32.totalorder %s16, 0
      %p57 = por %p55, %p56
      %p58 = scmp.ne.s32.totalorder %s50, %s52
      %p59 = scmp.eq.s32.totalorder %s21, 1
      %p60 = por %p58, %p59
      %p61 = scmp.ne.s32.totalorder %s52, %s53
      %p62 = scmp.eq.s32.totalorder %s21, 0
      %p63 = por %p61, %p62
      %p64 = scmp.ne.s32.totalorder %s52, %s53
      %p65 = scmp.eq.s32.totalorder %s22, 1
      %p66 = por %p64, %p65
      %p68 = scmp.ne.s32.totalorder %s53, %s67
      %p69 = scmp.eq.s32.totalorder %s22, 0
      %p70 = por %p68, %p69
      %s72 = sadd.s32 %s71, 1
      %p75 = scmp.eq.s32.totalorder %s16, 1
      %p76 = scmp.ne.s32.totalorder %s71, %s73
      %p77 = scmp.eq.s32.totalorder %s16, 0
      %p78 = por %p76, %p77
      %p79 = scmp.ne.s32.totalorder %s71, %s73
      %p80 = scmp.eq.s32.totalorder %s21, 1
      %p81 = por %p79, %p80
      %p82 = scmp.ne.s32.totalorder %s73, %s74
      %p83 = scmp.eq.s32.totalorder %s21, 0
      %p84 = por %p82, %p83
      %p85 = scmp.ne.s32.totalorder %s73, %s74
      %p86 = scmp.eq.s32.totalorder %s22, 1
      %p87 = por %p85, %p86
      %p89 = scmp.ne.s32.totalorder %s74, %s88
      %p90 = scmp.eq.s32.totalorder %s22, 0
      %p91 = por %p89, %p90
      %s92 = ssub.s32 %s16, %s23
      %p93 = scmp.eq.s32.totalorder %s92, 0
      %s95 = sadd.s32 %s94, 1
      %s96 = scalar_select %p93, %s94, %s95
      %p99 = pneg %p93
      %p100 = scmp.eq.s32.totalorder %s16, 1
      %p101 = por %p99, %p100
      %p102 = scmp.ne.s32.totalorder %s94, %s97
      %p103 = scmp.eq.s32.totalorder %s16, 0
      %p104 = por %p102, %p103
      %p105 = scmp.ne.s32.totalorder %s94, %s97
      %p106 = scmp.eq.s32.totalorder %s21, 1
      %p107 = por %p105, %p106
      %p108 = scmp.ne.s32.totalorder %s97, %s98
      %p109 = scmp.eq.s32.totalorder %s21, 0
      %p110 = por %p108, %p109
      %p111 = scmp.ne.s32.totalorder %s97, %s98
      %p112 = scmp.eq.s32.totalorder %s22, 1
      %p113 = por %p111, %p112
      %p115 = scmp.ne.s32.totalorder %s98, %s114
      %p116 = scmp.eq.s32.totalorder %s22, 0
      %p117 = por %p115, %p116
      %p118 = scmp.le.s32.totalorder 1, %s16
      %p119 = scmp.lt.s32.totalorder %s16, 3
      %p120 = pnand %p118, %p119
      %p121 = pneg %p120
      // Predicated region
      $region9: #{tpu_custom_call.1} parent=5 // pred_check
        _
      $region10: #{tpu_custom_call.1} parent=5 // pred_check_branch
        %123 = sbr.rel (%p120) target = $region12
      $region11: #{tpu_custom_call.1} parent=5 // pred_region
        %s124 = ssub.s32 %s16, 1
        // Predicated region
        $region13: #{tpu_custom_call.1} parent=11 // pred_check
          %p125 = pneg %p63
        $region14: #{tpu_custom_call.1} parent=11 // pred_check_branch
          %127 = sbr.rel (%p125) target = $region16
        $region15: #{tpu_custom_call.1} parent=11 // pred_region
          %129 = vsyncadd [#allocation6], 0
          %s131 = sshll.u32 %s1, 4
          %s132 = int_to_ptr.hbm [resolvable:$true] %s131
          %s133 = sshll.u32 [#allocation5], 4
          %s134 = int_to_ptr.vmem [resolvable:$true] %s133
          %136 = dma.hbm_to_vmem [thread:$0]  %s132, 64, %s134, [#allocation6]
        $region16: #{tpu_custom_call.1} parent=11 // pred_fallthru
          _
        // Predicated region
        $region17: #{tpu_custom_call.1} parent=11 // pred_check
          %p137 = pneg %p84
        $region18: #{tpu_custom_call.1} parent=11 // pred_check_branch
          %139 = sbr.rel (%p137) target = $region20
        $region19: #{tpu_custom_call.1} parent=11 // pred_region
          %141 = vsyncadd [#allocation6], 0
          %s143 = sshll.u32 %s2, 4
          %s144 = int_to_ptr.hbm [resolvable:$true] %s143
          %s145 = sshll.u32 [#allocation7], 4
          %s146 = int_to_ptr.vmem [resolvable:$true] %s145
          %148 = dma.hbm_to_vmem [thread:$0]  %s144, 64, %s146, [#allocation6]
        $region20: #{tpu_custom_call.1} parent=11 // pred_fallthru
          _
      $region12: #{tpu_custom_call.1} parent=5 // pred_fallthru
        _
      %p149 = scmp.lt.s32.totalorder %s16, 2
      // Predicated region
      $region21: #{tpu_custom_call.1} parent=5 // pred_check
        %p150 = pneg %p149
      $region22: #{tpu_custom_call.1} parent=5 // pred_check_branch
        %152 = sbr.rel (%p150) target = $region24
      $region23: #{tpu_custom_call.1} parent=5 // pred_region
        // Predicated region
        $region25: #{tpu_custom_call.1} parent=23 // pred_check
          %p153 = pneg %p36
        $region26: #{tpu_custom_call.1} parent=23 // pred_check_branch
          %155 = sbr.rel (%p153) target = $region28
        $region27: #{tpu_custom_call.1} parent=23 // pred_region
          %s156 = sand.u32 %s26, 1
          %s157 = scalar_lea.sflag [#allocation3], %s156
          %s158 = sand.u32 %s26, 1
          %s159 = smul.addr %s158, 256
          %s160 = scalar_lea.vmem [#allocation2], %s159
          %s161 = smul.u32 2, %s16
          %163 = vsyncadd %s157, 0
          %s164 = smul.addr %s161, 16
          %s165 = smul.addr %s164, 8
          %s166 = scalar_lea.hbm %s0, %s165
          %s167 = sshll.u32 %s166, 4
          %s168 = int_to_ptr.hbm [resolvable:$true] %s167
          %s169 = sshll.u32 %s160, 4
          %s170 = int_to_ptr.vmem [resolvable:$true] %s169
          %175 = dma.hbm_to_vmem [thread:$0]  %s168, 4096, %s170, %s157, 256, 256, 16
        $region28: #{tpu_custom_call.1} parent=23 // pred_fallthru
          _
      $region24: #{tpu_custom_call.1} parent=5 // pred_fallthru
        _
      %p176 = scmp.le.s32.totalorder 1, %s16
      %p177 = scmp.lt.s32.totalorder %s16, 3
      %p178 = pnand %p176, %p177
      %p179 = pneg %p178
      // Predicated region
      $region29: #{tpu_custom_call.1} parent=5 // pred_check
        _
      $region30: #{tpu_custom_call.1} parent=5 // pred_check_branch
        %181 = sbr.rel (%p178) target = $region32
      $region31: #{tpu_custom_call.1} parent=5 // pred_region
        %s182 = ssub.s32 %s16, 1
        %s183 = sand.u32 %s29, 1
        %s184 = scalar_lea.sflag [#allocation3], %s183
        %s185 = sand.u32 %s29, 1
        %s186 = smul.addr %s185, 256
        %s187 = scalar_lea.vmem [#allocation2], %s186
        // Predicated region
        $region33: #{tpu_custom_call.1} parent=31 // pred_check
          %p188 = pneg %p42
        $region34: #{tpu_custom_call.1} parent=31 // pred_check_branch
          %190 = sbr.rel (%p188) target = $region36
        $region35: #{tpu_custom_call.1} parent=31 // pred_region
          %192 = dma.done %s184, 4096
        $region36: #{tpu_custom_call.1} parent=31 // pred_fallthru
          _
        // Predicated region
        $region37: #{tpu_custom_call.1} parent=31 // pred_check
          %p193 = pneg %p63
        $region38: #{tpu_custom_call.1} parent=31 // pred_check_branch
          %195 = sbr.rel (%p193) target = $region40
        $region39: #{tpu_custom_call.1} parent=31 // pred_region
          %197 = dma.done [#allocation6], 64
        $region40: #{tpu_custom_call.1} parent=31 // pred_fallthru
          _
        // Predicated region
        $region41: #{tpu_custom_call.1} parent=31 // pred_check
          %p198 = pneg %p84
        $region42: #{tpu_custom_call.1} parent=31 // pred_check_branch
          %200 = sbr.rel (%p198) target = $region44
        $region43: #{tpu_custom_call.1} parent=31 // pred_region
          %202 = dma.done [#allocation6], 64
        $region44: #{tpu_custom_call.1} parent=31 // pred_fallthru
          _
        %s203 = sand.u32 %s29, 1
        %s204 = scalar_lea.sflag [#allocation3], %s203
        %s205 = sand.u32 %s29, 1
        %s206 = smul.addr %s205, 256
        %s207 = scalar_lea.vmem [#allocation2], %s206
        %p208 = pneg %p42
        %p209 = pneg %p39
        %p210 = pneg %p63
        %p211 = pneg %p60
        %p212 = pneg %p84
        %p213 = pneg %p81
        %p214 = pneg %p110
        %p215 = pneg %p107
        %s216 = sand.u32 %s97, 1
        %s217 = scalar_lea.sflag [#allocation4], %s216
        %s218 = sand.u32 %s97, 1
        %s219 = smul.addr %s218, 256
        %s220 = scalar_lea.vmem [#allocation8], %s219
        %s221 = smul.u32 2, %s21
        %s222 = smul.u32 2, %s21
        %v223 = vld [vmem:[%s187] sm:$0xff]
        %v224 = vld [vmem:[%s187 + $0x8] sm:$0xff]
        %v225 = vld [vmem:[%s187 + $0x10] sm:$0xff]
        %v226 = vld [vmem:[%s187 + $0x18] sm:$0xff]
        %v227 = vld [vmem:[%s187 + $0x20] sm:$0xff]
        %v228 = vld [vmem:[%s187 + $0x28] sm:$0xff]
        %v229 = vld [vmem:[%s187 + $0x30] sm:$0xff]
        %v230 = vld [vmem:[%s187 + $0x38] sm:$0xff]
        %v231 = vld [vmem:[%s187 + $0x40] sm:$0xff]
        %v232 = vld [vmem:[%s187 + $0x48] sm:$0xff]
        %v233 = vld [vmem:[%s187 + $0x50] sm:$0xff]
        %v234 = vld [vmem:[%s187 + $0x58] sm:$0xff]
        %v235 = vld [vmem:[%s187 + $0x60] sm:$0xff]
        %v236 = vld [vmem:[%s187 + $0x68] sm:$0xff]
        %v237 = vld [vmem:[%s187 + $0x70] sm:$0xff]
        %v238 = vld [vmem:[%s187 + $0x78] sm:$0xff]
        %v239 = vld [vmem:[%s187 + $0x80] sm:$0xff]
        %v240 = vld [vmem:[%s187 + $0x88] sm:$0xff]
        %v241 = vld [vmem:[%s187 + $0x90] sm:$0xff]
        %v242 = vld [vmem:[%s187 + $0x98] sm:$0xff]
        %v243 = vld [vmem:[%s187 + $0xa0] sm:$0xff]
        %v244 = vld [vmem:[%s187 + $0xa8] sm:$0xff]
        %v245 = vld [vmem:[%s187 + $0xb0] sm:$0xff]
        %v246 = vld [vmem:[%s187 + $0xb8] sm:$0xff]
        %v247 = vld [vmem:[%s187 + $0xc0] sm:$0xff]
        %v248 = vld [vmem:[%s187 + $0xc8] sm:$0xff]
        %v249 = vld [vmem:[%s187 + $0xd0] sm:$0xff]
        %v250 = vld [vmem:[%s187 + $0xd8] sm:$0xff]
        %v251 = vld [vmem:[%s187 + $0xe0] sm:$0xff]
        %v252 = vld [vmem:[%s187 + $0xe8] sm:$0xff]
        %v253 = vld [vmem:[%s187 + $0xf0] sm:$0xff]
        %v254 = vld [vmem:[%s187 + $0xf8] sm:$0xff]
        %v255 = vadd.f32 %v223, %v224
        %256 = vadd.xlane.f32.xlu0 %v255
        %v257 = vpop.xlane.xlu0 %256
        %v258 = vadd.f32 %v225, %v226
        %259 = vadd.xlane.f32.xlu0 %v258
        %v260 = vpop.xlane.xlu0 %259
        %v261 = vadd.f32 %v227, %v228
        %262 = vadd.xlane.f32.xlu0 %v261
        %v263 = vpop.xlane.xlu0 %262
        %v264 = vadd.f32 %v229, %v230
        %265 = vadd.xlane.f32.xlu0 %v264
        %v266 = vpop.xlane.xlu0 %265
        %v267 = vadd.f32 %v231, %v232
        %268 = vadd.xlane.f32.xlu0 %v267
        %v269 = vpop.xlane.xlu0 %268
        %v270 = vadd.f32 %v233, %v234
        %271 = vadd.xlane.f32.xlu0 %v270
        %v272 = vpop.xlane.xlu0 %271
        %v273 = vadd.f32 %v235, %v236
        %274 = vadd.xlane.f32.xlu0 %v273
        %v275 = vpop.xlane.xlu0 %274
        %v276 = vadd.f32 %v237, %v238
        %277 = vadd.xlane.f32.xlu0 %v276
        %v278 = vpop.xlane.xlu0 %277
        %v279 = vadd.f32 %v239, %v240
        %280 = vadd.xlane.f32.xlu0 %v279
        %v281 = vpop.xlane.xlu0 %280
        %v282 = vadd.f32 %v241, %v242
        %283 = vadd.xlane.f32.xlu0 %v282
        %v284 = vpop.xlane.xlu0 %283
        %v285 = vadd.f32 %v243, %v244
        %286 = vadd.xlane.f32.xlu0 %v285
        %v287 = vpop.xlane.xlu0 %286
        %v288 = vadd.f32 %v245, %v246
        %289 = vadd.xlane.f32.xlu0 %v288
        %v290 = vpop.xlane.xlu0 %289
        %v291 = vadd.f32 %v247, %v248
        %292 = vadd.xlane.f32.xlu0 %v291
        %v293 = vpop.xlane.xlu0 %292
        %v294 = vadd.f32 %v249, %v250
        %295 = vadd.xlane.f32.xlu0 %v294
        %v296 = vpop.xlane.xlu0 %295
        %v297 = vadd.f32 %v251, %v252
        %298 = vadd.xlane.f32.xlu0 %v297
        %v299 = vpop.xlane.xlu0 %298
        %v300 = vadd.f32 %v253, %v254
        %301 = vadd.xlane.f32.xlu0 %v300
        %v302 = vpop.xlane.xlu0 %301
        %v303 = vmul.f32 %v257, 0.00390625
        %v304 = vmul.f32 %v260, 0.00390625
        %v305 = vmul.f32 %v263, 0.00390625
        %v306 = vmul.f32 %v266, 0.00390625
        %v307 = vmul.f32 %v269, 0.00390625
        %v308 = vmul.f32 %v272, 0.00390625
        %v309 = vmul.f32 %v275, 0.00390625
        %v310 = vmul.f32 %v278, 0.00390625
        %v311 = vmul.f32 %v281, 0.00390625
        %v312 = vmul.f32 %v284, 0.00390625
        %v313 = vmul.f32 %v287, 0.00390625
        %v314 = vmul.f32 %v290, 0.00390625
        %v315 = vmul.f32 %v293, 0.00390625
        %v316 = vmul.f32 %v296, 0.00390625
        %v317 = vmul.f32 %v299, 0.00390625
        %v318 = vmul.f32 %v302, 0.00390625
        %v319 = vld [vmem:[#allocation5] sm:$0xf]
        %v336 = vlaneseq
        %v337 = vand.u32 %v336, 127
        %v338 = vperm.slane %v303, %v337
        %v339 = vadd.s32 %v337, 4294967288
        %v340 = vperm.slane %v304, %v339
        %vm341 = vcmask 130112
        %v342 = vsel %vm341, %v340, %v338
        %v343 = vadd.s32 %v337, 4294967280
        %v344 = vperm.slane %v305, %v343
        %vm345 = vcmask 195712
        %v346 = vsel %vm345, %v344, %v342
        %v347 = vadd.s32 %v337, 4294967272
        %v348 = vperm.slane %v306, %v347
        %vm349 = vcmask 261312
        %v350 = vsel %vm349, %v348, %v346
        %v351 = vadd.s32 %v337, 4294967264
        %v352 = vperm.slane %v307, %v351
        %vm353 = vcmask 326912
        %v354 = vsel %vm353, %v352, %v350
        %v355 = vadd.s32 %v337, 4294967256
        %v356 = vperm.slane %v308, %v355
        %vm357 = vcmask 392512
        %v358 = vsel %vm357, %v356, %v354
        %v359 = vadd.s32 %v337, 4294967248
        %v360 = vperm.slane %v309, %v359
        %vm361 = vcmask 458112
        %v362 = vsel %vm361, %v360, %v358
        %v363 = vadd.s32 %v337, 4294967240
        %v364 = vperm.slane %v310, %v363
        %vm365 = vcmask 523712
        %v366 = vsel %vm365, %v364, %v362
        %v367 = vperm.slane %v311, %v337
        %v368 = vperm.slane %v312, %v339
        %v369 = vsel %vm341, %v368, %v367
        %v370 = vperm.slane %v313, %v343
        %v371 = vsel %vm345, %v370, %v369
        %v372 = vperm.slane %v314, %v347
        %v373 = vsel %vm349, %v372, %v371
        %v374 = vperm.slane %v315, %v351
        %v375 = vsel %vm353, %v374, %v373
        %v376 = vperm.slane %v316, %v355
        %v377 = vsel %vm357, %v376, %v375
        %v378 = vperm.slane %v317, %v359
        %v379 = vsel %vm361, %v378, %v377
        %v380 = vperm.slane %v318, %v363
        %v381 = vsel %vm365, %v380, %v379
        %vm382 = vcmask 1041409
        %v383 = vsel %vm382, %v381, %v366
        %vm384 = vcmask 523264
        %v385 = vsel %vm384, %v383, 0
        %v388 = vsel %vm384, %v319, 0
        %390 = vmatpush.xpose.msra.mxu0 0.0
        %391 = vmatpush.xpose.msra.mxu0 0.0
        %392 = vmatpush.xpose.msra.mxu0 0.0
        %393 = vmatpush.xpose.msra.mxu0 0.0
        %394 = vmatpush.xpose.msra.mxu0 0.0
        %395 = vmatpush.xpose.msra.mxu0 0.0
        %396 = vmatpush.xpose.msra.mxu0 0.0
        %397 = vmatpush.xpose.msra.mxu0 0.0
        %398 = vmatpush.xpose.msra.mxu0 0.0
        %399 = vmatpush.xpose.msra.mxu0 0.0
        %400 = vmatpush.xpose.msra.mxu0 0.0
        %401 = vmatpush.xpose.msra.mxu0 0.0
        %402 = vmatpush.xpose.msra.mxu0 0.0
        %403 = vmatpush.xpose.msra.mxu0 0.0
        %404 = vmatpush.xpose.msra.mxu0 0.0
        %405 = vmatpush.xpose.msra.mxu0 %v388
        %406 = vmatmul.f32.gmra.mxu0 %v385
        %v407 = vpop.f32.mrf.mxu0
        %v408 = vadd.f32 0.0, %v407
        %409 = vdwg.mxu0
        %v410 = vmax.f32 %v408, 0.0
        %v411 = vld [vmem:[#allocation7] sm:$0xf]
        %vm412 = vcmask 31744
        %v414 = vsel %vm412, %v410, 0
        %vm416 = vcmask 1043456
        %v418 = vsel %vm416, %v411, 0
        %420 = vmatpush.msra.mxu0 0.0
        %421 = vmatpush.msra.mxu0 0.0
        %422 = vmatpush.msra.mxu0 0.0
        %423 = vmatpush.msra.mxu0 0.0
        %424 = vmatpush.msra.mxu0 0.0
        %425 = vmatpush.msra.mxu0 0.0
        %426 = vmatpush.msra.mxu0 0.0
        %427 = vmatpush.msra.mxu0 0.0
        %428 = vmatpush.msra.mxu0 0.0
        %429 = vmatpush.msra.mxu0 0.0
        %430 = vmatpush.msra.mxu0 0.0
        %431 = vmatpush.msra.mxu0 0.0
        %432 = vmatpush.msra.mxu0 0.0
        %433 = vmatpush.msra.mxu0 0.0
        %434 = vmatpush.msra.mxu0 0.0
        %435 = vmatpush.msra.mxu0 %v418
        %436 = vmatmul.f32.gmra.mxu0 %v414
        %v437 = vpop.f32.mrf.mxu0
        %v438 = vadd.f32 0.0, %v437
        %439 = vdwg.mxu0
        %v440 = vxor.u32 %v438, 2147483648
        %v441 = vmul.f32 %v440, 1.442695
        %v442 = vpow.pop %v441
        %v443 = vadd.f32 %v442, 1.0
        %v444 = vrcp.pop %v443
        %v445 = vmul.f32 %v443, %v444
        %v446 = vsub.f32 1.0, %v445
        %v447 = vmul.f32 %v444, %v446
        %v448 = vadd.f32 %v444, %v447
        %vm449 = vweird.f32 %v443
        %vm450 = vweird.f32 %v444
        %vm451 = vmor %vm449, %vm450
        %v452 = vsel %vm451, %v444, %v448
        %v453 = vand.u32 2147483647, %v443
        %vm454 = vcmp.eq.f32.partialorder %v453, 8.507059e+37
        %v455 = vand.u32 %v443, 2147483648
        %v456 = vor.u32 1.1754944e-38, %v455
        %v457 = vsel %vm454, %v456, %v452
        %v458 = vmul.f32 1.0, %v457
        %v459 = vperm.slane %v458, 0
        %v460 = vlaneseq
        %v461 = vshrl.u32 %v460, 7
        %463 = vset.pattern.permute.xlu0 %v461
        %464 = vperm.xlu0 %463, %v459
        %v465 = vpop.permute.xlu0 %464
        %v466 = vlaneseq
        %v467 = vshrl.u32 %v466, 7
        %v468 = vadd.s32 %v467, 8
        %469 = vset.pattern.permute.xlu0 %v468
        %470 = vperm.xlu0 %469, %v459
        %v471 = vpop.permute.xlu0 %470
        %v472 = vlaneseq
        %v473 = vshrl.u32 %v472, 7
        %v474 = vadd.s32 %v473, 16
        %475 = vset.pattern.permute.xlu0 %v474
        %476 = vperm.xlu0 %475, %v459
        %v477 = vpop.permute.xlu0 %476
        %v478 = vlaneseq
        %v479 = vshrl.u32 %v478, 7
        %v480 = vadd.s32 %v479, 24
        %481 = vset.pattern.permute.xlu0 %v480
        %482 = vperm.xlu0 %481, %v459
        %v483 = vpop.permute.xlu0 %482
        %v484 = vlaneseq
        %v485 = vshrl.u32 %v484, 7
        %v486 = vadd.s32 %v485, 32
        %487 = vset.pattern.permute.xlu0 %v486
        %488 = vperm.xlu0 %487, %v459
        %v489 = vpop.permute.xlu0 %488
        %v490 = vlaneseq
        %v491 = vshrl.u32 %v490, 7
        %v492 = vadd.s32 %v491, 40
        %493 = vset.pattern.permute.xlu0 %v492
        %494 = vperm.xlu0 %493, %v459
        %v495 = vpop.permute.xlu0 %494
        %v496 = vlaneseq
        %v497 = vshrl.u32 %v496, 7
        %v498 = vadd.s32 %v497, 48
        %499 = vset.pattern.permute.xlu0 %v498
        %500 = vperm.xlu0 %499, %v459
        %v501 = vpop.permute.xlu0 %500
        %v502 = vlaneseq
        %v503 = vshrl.u32 %v502, 7
        %v504 = vadd.s32 %v503, 56
        %505 = vset.pattern.permute.xlu0 %v504
        %506 = vperm.xlu0 %505, %v459
        %v507 = vpop.permute.xlu0 %506
        %v508 = vperm.slane %v458, 1
        %v509 = vlaneseq
        %v510 = vshrl.u32 %v509, 7
        %512 = vset.pattern.permute.xlu0 %v510
        %513 = vperm.xlu0 %512, %v508
        %v514 = vpop.permute.xlu0 %513
        %v515 = vlaneseq
        %v516 = vshrl.u32 %v515, 7
        %v517 = vadd.s32 %v516, 8
        %518 = vset.pattern.permute.xlu0 %v517
        %519 = vperm.xlu0 %518, %v508
        %v520 = vpop.permute.xlu0 %519
        %v521 = vlaneseq
        %v522 = vshrl.u32 %v521, 7
        %v523 = vadd.s32 %v522, 16
        %524 = vset.pattern.permute.xlu0 %v523
        %525 = vperm.xlu0 %524, %v508
        %v526 = vpop.permute.xlu0 %525
        %v527 = vlaneseq
        %v528 = vshrl.u32 %v527, 7
        %v529 = vadd.s32 %v528, 24
        %530 = vset.pattern.permute.xlu0 %v529
        %531 = vperm.xlu0 %530, %v508
        %v532 = vpop.permute.xlu0 %531
        %v533 = vlaneseq
        %v534 = vshrl.u32 %v533, 7
        %v535 = vadd.s32 %v534, 32
        %536 = vset.pattern.permute.xlu0 %v535
        %537 = vperm.xlu0 %536, %v508
        %v538 = vpop.permute.xlu0 %537
        %v539 = vlaneseq
        %v540 = vshrl.u32 %v539, 7
        %v541 = vadd.s32 %v540, 40
        %542 = vset.pattern.permute.xlu0 %v541
        %543 = vperm.xlu0 %542, %v508
        %v544 = vpop.permute.xlu0 %543
        %v545 = vlaneseq
        %v546 = vshrl.u32 %v545, 7
        %v547 = vadd.s32 %v546, 48
        %548 = vset.pattern.permute.xlu0 %v547
        %549 = vperm.xlu0 %548, %v508
        %v550 = vpop.permute.xlu0 %549
        %v551 = vlaneseq
        %v552 = vshrl.u32 %v551, 7
        %v553 = vadd.s32 %v552, 56
        %554 = vset.pattern.permute.xlu0 %v553
        %555 = vperm.xlu0 %554, %v508
        %v556 = vpop.permute.xlu0 %555
        %v557 = vmul.f32 %v223, %v465
        %v558 = vmul.f32 %v224, %v465
        %v559 = vmul.f32 %v225, %v471
        %v560 = vmul.f32 %v226, %v471
        %v561 = vmul.f32 %v227, %v477
        %v562 = vmul.f32 %v228, %v477
        %v563 = vmul.f32 %v229, %v483
        %v564 = vmul.f32 %v230, %v483
        %v565 = vmul.f32 %v231, %v489
        %v566 = vmul.f32 %v232, %v489
        %v567 = vmul.f32 %v233, %v495
        %v568 = vmul.f32 %v234, %v495
        %v569 = vmul.f32 %v235, %v501
        %v570 = vmul.f32 %v236, %v501
        %v571 = vmul.f32 %v237, %v507
        %v572 = vmul.f32 %v238, %v507
        %v573 = vmul.f32 %v239, %v514
        %v574 = vmul.f32 %v240, %v514
        %v575 = vmul.f32 %v241, %v520
        %v576 = vmul.f32 %v242, %v520
        %v577 = vmul.f32 %v243, %v526
        %v578 = vmul.f32 %v244, %v526
        %v579 = vmul.f32 %v245, %v532
        %v580 = vmul.f32 %v246, %v532
        %v581 = vmul.f32 %v247, %v538
        %v582 = vmul.f32 %v248, %v538
        %v583 = vmul.f32 %v249, %v544
        %v584 = vmul.f32 %v250, %v544
        %v585 = vmul.f32 %v251, %v550
        %v586 = vmul.f32 %v252, %v550
        %v587 = vmul.f32 %v253, %v556
        %v588 = vmul.f32 %v254, %v556
        %589 = vst [vmem:[%s220] sm:$0xff] %v557
        %590 = vst [vmem:[%s220 + $0x8] sm:$0xff] %v558
        %591 = vst [vmem:[%s220 + $0x10] sm:$0xff] %v559
        %592 = vst [vmem:[%s220 + $0x18] sm:$0xff] %v560
        %593 = vst [vmem:[%s220 + $0x20] sm:$0xff] %v561
        %594 = vst [vmem:[%s220 + $0x28] sm:$0xff] %v562
        %595 = vst [vmem:[%s220 + $0x30] sm:$0xff] %v563
        %596 = vst [vmem:[%s220 + $0x38] sm:$0xff] %v564
        %597 = vst [vmem:[%s220 + $0x40] sm:$0xff] %v565
        %598 = vst [vmem:[%s220 + $0x48] sm:$0xff] %v566
        %599 = vst [vmem:[%s220 + $0x50] sm:$0xff] %v567
        %600 = vst [vmem:[%s220 + $0x58] sm:$0xff] %v568
        %601 = vst [vmem:[%s220 + $0x60] sm:$0xff] %v569
        %602 = vst [vmem:[%s220 + $0x68] sm:$0xff] %v570
        %603 = vst [vmem:[%s220 + $0x70] sm:$0xff] %v571
        %604 = vst [vmem:[%s220 + $0x78] sm:$0xff] %v572
        %605 = vst [vmem:[%s220 + $0x80] sm:$0xff] %v573
        %606 = vst [vmem:[%s220 + $0x88] sm:$0xff] %v574
        %607 = vst [vmem:[%s220 + $0x90] sm:$0xff] %v575
        %608 = vst [vmem:[%s220 + $0x98] sm:$0xff] %v576
        %609 = vst [vmem:[%s220 + $0xa0] sm:$0xff] %v577
        %610 = vst [vmem:[%s220 + $0xa8] sm:$0xff] %v578
        %611 = vst [vmem:[%s220 + $0xb0] sm:$0xff] %v579
        %612 = vst [vmem:[%s220 + $0xb8] sm:$0xff] %v580
        %613 = vst [vmem:[%s220 + $0xc0] sm:$0xff] %v581
        %614 = vst [vmem:[%s220 + $0xc8] sm:$0xff] %v582
        %615 = vst [vmem:[%s220 + $0xd0] sm:$0xff] %v583
        %616 = vst [vmem:[%s220 + $0xd8] sm:$0xff] %v584
        %617 = vst [vmem:[%s220 + $0xe0] sm:$0xff] %v585
        %618 = vst [vmem:[%s220 + $0xe8] sm:$0xff] %v586
        %619 = vst [vmem:[%s220 + $0xf0] sm:$0xff] %v587
        %620 = vst [vmem:[%s220 + $0xf8] sm:$0xff] %v588
        %s621 = sand.u32 %s97, 1
        %s622 = scalar_lea.sflag [#allocation4], %s621
        %s623 = sand.u32 %s97, 1
        %s624 = smul.addr %s623, 256
        %s625 = scalar_lea.vmem [#allocation8], %s624
        // Predicated region
        $region45: #{tpu_custom_call.1} parent=31 // pred_check
          %p626 = pneg %p107
        $region46: #{tpu_custom_call.1} parent=31 // pred_check_branch
          %628 = sbr.rel (%p626) target = $region48
        $region47: #{tpu_custom_call.1} parent=31 // pred_region
          %s629 = smul.u32 2, %s21
          %631 = vsyncadd %s622, 0
          %s632 = smul.addr %s629, 16
          %s633 = smul.addr %s632, 8
          %s634 = scalar_lea.hbm %s3, %s633
          %s635 = sshll.u32 %s625, 4
          %s636 = int_to_ptr.vmem [resolvable:$true] %s635
          %s637 = sshll.u32 %s634, 4
          %s638 = int_to_ptr.hbm [resolvable:$true] %s637
          %643 = dma.vmem_to_hbm [thread:$0]  %s636, 4096, %s638, %s622, 256, 256, 16
        $region48: #{tpu_custom_call.1} parent=31 // pred_fallthru
          _
      $region32: #{tpu_custom_call.1} parent=5 // pred_fallthru
        _
      %p644 = scmp.le.s32.totalorder 2, %s16
      // Predicated region
      $region49: #{tpu_custom_call.1} parent=5 // pred_check
        %p645 = pneg %p644
      $region50: #{tpu_custom_call.1} parent=5 // pred_check_branch
        %647 = sbr.rel (%p645) target = $region52
      $region51: #{tpu_custom_call.1} parent=5 // pred_region
        %s648 = ssub.s32 %s16, 2
        // Predicated region
        $region53: #{tpu_custom_call.1} parent=51 // pred_check
          %p649 = pneg %p113
        $region54: #{tpu_custom_call.1} parent=51 // pred_check_branch
          %651 = sbr.rel (%p649) target = $region56
        $region55: #{tpu_custom_call.1} parent=51 // pred_region
          %s652 = sand.u32 %s98, 1
          %s653 = scalar_lea.sflag [#allocation4], %s652
          %s654 = sand.u32 %s98, 1
          %s655 = smul.addr %s654, 256
          %s656 = scalar_lea.vmem [#allocation8], %s655
          %658 = dma.done %s653, 4096
        $region56: #{tpu_custom_call.1} parent=51 // pred_fallthru
          _
      $region52: #{tpu_custom_call.1} parent=5 // pred_fallthru
        _
    $region6: #{tpu_custom_call.1} parent=1 // loop_footer
      %s20 = sadd.s32 1, %s16
    $region7: #{tpu_custom_call.1} parent=1 // loop_footer_branch
      %15 = sbr.rel target = $region3
    $region8: #{tpu_custom_call.1} parent=1 // loop_exit
      _
    %659 = vsyncpa [#allocation3], 1
    %s660 = scalar_lea.sflag [#allocation3], 1
    %661 = vsyncpa %s660, 1
    %662 = vsyncpa [#allocation6], 1
    %663 = vsyncpa [#allocation4], 1
    %s664 = scalar_lea.sflag [#allocation4], 1
    %665 = vsyncpa %s664, 1

</llo_original>
